<compile_context>
chip_gen: v7x
topology: tpu7x:2x2x1
jax: 0.10.0
libtpu: 0.0.40
codegen_flags: <defaults>
</compile_context>

<pallas_src>
import functools

import jax
import jax.numpy as jnp
from jax.experimental import pallas as pl
from jax.experimental.pallas import tpu as pltpu


H_PAD_UNIT = 128   # hidden padded to a multiple of this (MXU / lane native width)


def _round_up(x, m):
    return ((x + m - 1) // m) * m


def _dueling_q_kernel(action_size,
                      x_ref, w1_ref, b1_ref, wh1_ref, bh1_ref, wh2_ref, bh2_ref,
                      q_ref):
    """One batch tile of the dueling forward: 3 dependent MXU matmuls, f32 accumulation."""
    # Shared feature layer (f32 matmul -- tiny K, kept full precision).
    feat = jnp.dot(x_ref[...], w1_ref[...],
                   preferred_element_type=jnp.float32) + b1_ref[...]
    feat = jnp.maximum(feat, 0.0)                                   # (tile, H_PAD)

    # Fused value||advantage hidden layer in one matmul (bf16 operands, f32 acc).
    h = jnp.dot(feat.astype(jnp.bfloat16), wh1_ref[...],
                preferred_element_type=jnp.float32) + bh1_ref[...]
    h = jnp.maximum(h, 0.0)                                         # (tile, 2*H_PAD)

    # Fused block-diagonal output layer, Q_PAD lanes:
    #   columns [0, action_size)          -> A
    #   column  action_size               -> V
    #   columns (action_size, Q_PAD)      -> zero weights/bias (padding)
    va = jnp.dot(h.astype(jnp.bfloat16), wh2_ref[...],
                 preferred_element_type=jnp.float32) + bh2_ref[...]  # (tile, Q_PAD)

    a = va[:, :action_size]                     # (tile, action_size)
    v = va[:, action_size:action_size + 1]      # (tile, 1)

    if action_size == 2:
        # VPU-only mean (no XLU reduce on the serial critical path).
        a_mean = (a[:, 0:1] + a[:, 1:2]) * 0.5
    else:
        a_mean = jnp.sum(a, axis=-1, keepdims=True) * (1.0 / action_size)

    # Columns < action_size hold Q = A + V - mean(A); lanes >= action_size hold
    # defined-but-meaningless values and must not be read by consumers.
    q_ref[...] = (va + (v - a_mean)).astype(q_ref.dtype)


def init_params(key, state_size, action_size, hidden_size):
    """PyTorch nn.Linear default init: U(-1/sqrt(fan_in), 1/sqrt(fan_in)).
       Weights stored as (in_features, out_features)."""
    def linear(k, fan_in, fan_out):
        kw, kb = jax.random.split(k)
        bound = 1.0 / jnp.sqrt(fan_in)
        w = jax.random.uniform(kw, (fan_in, fan_out), jnp.float32, -bound, bound)
        b = jax.random.uniform(kb, (1, fan_out), jnp.float32, -bound, bound)
        return w, b

    keys = jax.random.split(key, 5)
    w1, b1 = linear(keys[0], state_size, hidden_size)
    wv1, bv1 = linear(keys[1], hidden_size, hidden_size)
    wv2, bv2 = linear(keys[2], hidden_size, 1)
    wa1, ba1 = linear(keys[3], hidden_size, hidden_size)
    wa2, ba2 = linear(keys[4], hidden_size, action_size)
    return dict(w1=w1, b1=b1, wv1=wv1, bv1=bv1, wv2=wv2, bv2=bv2,
                wa1=wa1, ba1=ba1, wa2=wa2, ba2=ba2)


def pack_params(p, action_size):
    """One-time repack: fuse V/A heads, zero-pad hidden to 128 lanes, narrow Q_PAD
       output, cast second/third-layer MXU operands to bf16."""
    state_size, hidden = p["w1"].shape
    hp = _round_up(hidden, H_PAD_UNIT)                  # padded hidden width (>=128)
    q_pad = max(8, _round_up(action_size + 1, 8))       # narrow, full-last-dim output

    # Layer 1 (kept f32): columns [hidden, hp) are zero -> feat padding lanes are 0.
    w1 = jnp.zeros((state_size, hp), jnp.float32).at[:, :hidden].set(p["w1"])
    b1 = jnp.zeros((1, hp), jnp.float32).at[:, :hidden].set(p["b1"])

    # Fused hidden layer: columns [0, hp) -> value path, [hp, 2*hp) -> advantage path.
    wh1 = jnp.zeros((hp, 2 * hp), jnp.float32)
    wh1 = wh1.at[:hidden, :hidden].set(p["wv1"])
    wh1 = wh1.at[:hidden, hp:hp + hidden].set(p["wa1"])
    bh1 = jnp.zeros((1, 2 * hp), jnp.float32)
    bh1 = bh1.at[:, :hidden].set(p["bv1"])
    bh1 = bh1.at[:, hp:hp + hidden].set(p["ba1"])

    # Block-diagonal output layer padded to q_pad lanes: [A | V | zeros].
    wh2 = jnp.zeros((2 * hp, q_pad), jnp.float32)
    wh2 = wh2.at[hp:hp + hidden, :action_size].set(p["wa2"])            # adv -> A cols
    wh2 = wh2.at[:hidden, action_size:action_size + 1].set(p["wv2"])    # val -> V col
    bh2 = jnp.zeros((1, q_pad), jnp.float32)
    bh2 = bh2.at[0, :action_size].set(p["ba2"][0])
    bh2 = bh2.at[0, action_size].set(p["bv2"][0, 0])

    return dict(
        w1=w1, b1=b1,                                    # f32 first layer
        wh1=wh1.astype(jnp.bfloat16), bh1=bh1,
        wh2=wh2.astype(jnp.bfloat16), bh2=bh2,
        action_size=action_size, q_pad=q_pad, hidden_pad=hp,
    )


def dueling_q_forward(state, packed, max_tile_n=2048):
    """Batch-gridded fused forward. Weights stay VMEM-resident; x and a narrow
       Q_PAD-lane f32 output tile stream per grid step."""
    n, state_size = state.shape
    action_size = packed["action_size"]
    q_pad = packed["q_pad"]
    hp = packed["hidden_pad"]

    # Balanced tiling: tile ~= ceil(n / num_tiles), rounded to the f32 sublane (8),
    # so padding never approaches a full extra tile for awkward batch sizes.
    num_tiles = -(-n // max_tile_n)
    tile_n = _round_up(-(-n // num_tiles), 8)
    n_pad = tile_n * num_tiles

    x = state                                   # f32 input: layer-1 accuracy, tiny DMA
    if n_pad != n:
        x = jnp.pad(x, ((0, n_pad - n), (0, 0)))

    weight_args = [packed["w1"], packed["b1"],
                   packed["wh1"], packed["bh1"],
                   packed["wh2"], packed["bh2"]]

    in_specs = [pl.BlockSpec((tile_n, state_size), lambda i: (i, 0))] + [
        pl.BlockSpec(w.shape, lambda i: (0, 0)) for w in weight_args  # VMEM-resident
    ]
    out_spec = pl.BlockSpec((tile_n, q_pad), lambda i: (i, 0))

    flops = 2 * n_pad * (state_size * hp + hp * 2 * hp + 2 * hp * q_pad)
    bytes_accessed = int(x.size) * x.dtype.itemsize \
        + sum(int(w.size) * w.dtype.itemsize for w in weight_args) \
        + n_pad * q_pad * 4

    q_padded = pl.pallas_call(
        functools.partial(_dueling_q_kernel, action_size),
        out_shape=jax.ShapeDtypeStruct((n_pad, q_pad), jnp.float32),
        grid=(num_tiles,),
        in_specs=in_specs,
        out_specs=out_spec,
        compiler_params=pltpu.CompilerParams(
            dimension_semantics=("parallel",)),
        cost_estimate=pl.CostEstimate(
            flops=flops, transcendentals=0, bytes_accessed=bytes_accessed),
    )(x, *weight_args)

    # Rows >= n and lanes >= action_size are padding. The slab is only q_pad (=8)
    # lanes wide, so this slice is cheap; skip it entirely when nothing was padded.
    if n_pad == n and q_pad == action_size:
        return q_padded
    return q_padded[:n, :action_size]


def reference_forward(state, p):
    """Pure-JAX f32 reference (mirrors the PyTorch forward)."""
    feat = jnp.maximum(state @ p["w1"] + p["b1"], 0.0)
    v = jnp.maximum(feat @ p["wv1"] + p["bv1"], 0.0) @ p["wv2"] + p["bv2"]
    a = jnp.maximum(feat @ p["wa1"] + p["ba1"], 0.0) @ p["wa2"] + p["ba2"]
    return v + (a - jnp.mean(a, axis=-1, keepdims=True))


def reference_forward_mixed(state, p):
    """Reference mirroring the kernel's math: f32 layer 1, bf16-operand /
       f32-accumulate layers 2 and 3."""
    bf = jnp.bfloat16

    def mm_bf(x, w):
        return jax.lax.dot(x.astype(bf), w.astype(bf),
                           preferred_element_type=jnp.float32)

    feat = jnp.maximum(state @ p["w1"] + p["b1"], 0.0)
    v = mm_bf(jnp.maximum(mm_bf(feat, p["wv1"]) + p["bv1"], 0.0), p["wv2"]) + p["bv2"]
    a = mm_bf(jnp.maximum(mm_bf(feat, p["wa1"]) + p["ba1"], 0.0), p["wa2"]) + p["ba2"]
    return v + (a - jnp.mean(a, axis=-1, keepdims=True))


if __name__ == "__main__":
    # Shapes implied by the module docstring: state (N, 4) -> Q (N, 2)
    state_size, action_size, hidden_size = 4, 2, 32
    batch = 8

    key = jax.random.PRNGKey(0)
    key_params, key_state = jax.random.split(key)
    params = init_params(key_params, state_size, action_size, hidden_size)
    state = jax.random.normal(key_state, (batch, state_size), jnp.float32)

    packed = pack_params(params, action_size)
    q = dueling_q_forward(state, packed)
    q = jax.block_until_ready(q)

    q_ref_mixed = reference_forward_mixed(state, params)
    q_ref_f32 = reference_forward(state, params)

    assert q.shape == (batch, action_size)
    assert jnp.allclose(q, q_ref_mixed, atol=2e-3, rtol=2e-3), \
        "mismatch vs mixed-precision-mirrored JAX reference"
    assert jnp.allclose(q, q_ref_f32, atol=5e-2, rtol=5e-2), \
        "mismatch vs f32 JAX reference"

    print("KERNEL_OK")
</pallas_src>

<mosaic_0001>
module attributes {stable_mosaic.version = 11 : i64} {
  func.func @_dueling_q_kernel(%arg0: i32, %arg1: memref<8x4xf32, #tpu.memory_space<vmem>>, %arg2: memref<4x128xf32, #tpu.memory_space<vmem>>, %arg3: memref<1x128xf32, #tpu.memory_space<vmem>>, %arg4: memref<128x256xbf16, #tpu.memory_space<vmem>>, %arg5: memref<1x256xf32, #tpu.memory_space<vmem>>, %arg6: memref<256x8xbf16, #tpu.memory_space<vmem>>, %arg7: memref<1x8xf32, #tpu.memory_space<vmem>>, %arg8: memref<8x8xf32, #tpu.memory_space<vmem>>) attributes {dimension_semantics = [#tpu.dimension_semantics<parallel>], iteration_bounds = array<i64: 1>, scalar_prefetch = 0 : i64, scratch_operands = 0 : i64, tpu.core_type = #tpu.core_type<tc>, window_params = [{transform_indices = @transform_0, window_bounds = array<i64: 8, 4>}, {pipeline_mode = #tpu.pipeline_mode<synchronous>, transform_indices = @transform_1, window_bounds = array<i64: 4, 128>}, {pipeline_mode = #tpu.pipeline_mode<synchronous>, transform_indices = @transform_2, window_bounds = array<i64: 1, 128>}, {pipeline_mode = #tpu.pipeline_mode<synchronous>, transform_indices = @transform_3, window_bounds = array<i64: 128, 256>}, {pipeline_mode = #tpu.pipeline_mode<synchronous>, transform_indices = @transform_4, window_bounds = array<i64: 1, 256>}, {pipeline_mode = #tpu.pipeline_mode<synchronous>, transform_indices = @transform_5, window_bounds = array<i64: 256, 8>}, {pipeline_mode = #tpu.pipeline_mode<synchronous>, transform_indices = @transform_6, window_bounds = array<i64: 1, 8>}, {transform_indices = @transform_7, window_bounds = array<i64: 8, 8>}]} {
    %c0 = arith.constant 0 : index
    %c0_0 = arith.constant 0 : index
    %0 = vector.load %arg1[%c0, %c0_0] : memref<8x4xf32, #tpu.memory_space<vmem>>, vector<8x4xf32>
    %c0_1 = arith.constant 0 : index
    %c0_2 = arith.constant 0 : index
    %1 = vector.load %arg2[%c0_1, %c0_2] : memref<4x128xf32, #tpu.memory_space<vmem>>, vector<4x128xf32>
    %cst = arith.constant dense<0.000000e+00> : vector<8x128xf32>
    %2 = tpu.matmul %0, %1, %cst {dimension_numbers = #tpu.dot_dimension_numbers<[1], [0], [0], [1], [0, 0, 1, 1], [], []>} : vector<8x4xf32>, vector<4x128xf32>, vector<8x128xf32> -> vector<8x128xf32>
    %c0_3 = arith.constant 0 : index
    %c0_4 = arith.constant 0 : index
    %3 = vector.load %arg3[%c0_3, %c0_4] : memref<1x128xf32, #tpu.memory_space<vmem>>, vector<1x128xf32>
    %4 = vector.broadcast %3 : vector<1x128xf32> to vector<8x128xf32>
    %5 = arith.addf %2, %4 : vector<8x128xf32>
    %cst_5 = arith.constant 0.000000e+00 : f32
    %6 = vector.broadcast %cst_5 : f32 to vector<8x128xf32>
    %7 = arith.maximumf %5, %6 : vector<8x128xf32>
    %8 = arith.truncf %7 : vector<8x128xf32> to vector<8x128xbf16>
    %c0_6 = arith.constant 0 : index
    %c0_7 = arith.constant 0 : index
    %9 = vector.load %arg4[%c0_6, %c0_7] : memref<128x256xbf16, #tpu.memory_space<vmem>>, vector<128x256xbf16>
    %cst_8 = arith.constant dense<0.000000e+00> : vector<8x256xf32>
    %10 = tpu.matmul %8, %9, %cst_8 {dimension_numbers = #tpu.dot_dimension_numbers<[1], [0], [0], [1], [0, 0, 1, 1], [], []>} : vector<8x128xbf16>, vector<128x256xbf16>, vector<8x256xf32> -> vector<8x256xf32>
    %c0_9 = arith.constant 0 : index
    %c0_10 = arith.constant 0 : index
    %11 = vector.load %arg5[%c0_9, %c0_10] : memref<1x256xf32, #tpu.memory_space<vmem>>, vector<1x256xf32>
    %12 = vector.broadcast %11 : vector<1x256xf32> to vector<8x256xf32>
    %13 = arith.addf %10, %12 : vector<8x256xf32>
    %cst_11 = arith.constant 0.000000e+00 : f32
    %14 = vector.broadcast %cst_11 : f32 to vector<8x256xf32>
    %15 = arith.maximumf %13, %14 : vector<8x256xf32>
    %16 = arith.truncf %15 : vector<8x256xf32> to vector<8x256xbf16>
    %c0_12 = arith.constant 0 : index
    %c0_13 = arith.constant 0 : index
    %17 = vector.load %arg6[%c0_12, %c0_13] : memref<256x8xbf16, #tpu.memory_space<vmem>>, vector<256x8xbf16>
    %cst_14 = arith.constant dense<0.000000e+00> : vector<8x8xf32>
    %18 = tpu.matmul %16, %17, %cst_14 {dimension_numbers = #tpu.dot_dimension_numbers<[1], [0], [0], [1], [0, 0, 1, 1], [], []>} : vector<8x256xbf16>, vector<256x8xbf16>, vector<8x8xf32> -> vector<8x8xf32>
    %c0_15 = arith.constant 0 : index
    %c0_16 = arith.constant 0 : index
    %19 = vector.load %arg7[%c0_15, %c0_16] : memref<1x8xf32, #tpu.memory_space<vmem>>, vector<1x8xf32>
    %20 = vector.broadcast %19 : vector<1x8xf32> to vector<8x8xf32>
    %21 = arith.addf %18, %20 : vector<8x8xf32>
    %22 = vector.extract_strided_slice %21 {offsets = [0, 0], sizes = [8, 2], strides = [1, 1]} : vector<8x8xf32> to vector<8x2xf32>
    %23 = vector.extract_strided_slice %21 {offsets = [0, 2], sizes = [8, 1], strides = [1, 1]} : vector<8x8xf32> to vector<8x1xf32>
    %24 = vector.extract_strided_slice %22 {offsets = [0, 0], sizes = [8, 1], strides = [1, 1]} : vector<8x2xf32> to vector<8x1xf32>
    %25 = vector.extract_strided_slice %22 {offsets = [0, 1], sizes = [8, 1], strides = [1, 1]} : vector<8x2xf32> to vector<8x1xf32>
    %26 = arith.addf %24, %25 : vector<8x1xf32>
    %cst_17 = arith.constant 5.000000e-01 : f32
    %27 = vector.broadcast %cst_17 : f32 to vector<8x1xf32>
    %28 = arith.mulf %26, %27 : vector<8x1xf32>
    %29 = arith.subf %23, %28 : vector<8x1xf32>
    %30 = vector.broadcast %29 : vector<8x1xf32> to vector<8x8xf32>
    %31 = arith.addf %21, %30 : vector<8x8xf32>
    %c0_18 = arith.constant 0 : index
    %c0_19 = arith.constant 0 : index
    %32 = vector.load %arg8[%c0_18, %c0_19] : memref<8x8xf32, #tpu.memory_space<vmem>>, vector<8x8xf32>
    tpu.vector_store %arg8[%c0_18, %c0_19], %31 {strides = array<i32>} : memref<8x8xf32, #tpu.memory_space<vmem>>, vector<8x8xf32>,
    return
  }
  func.func @transform_0(%arg0: i32) -> (i32, i32) {
    %c0_i32 = arith.constant 0 : i32
    %c0_i32_0 = arith.constant 0 : i32
    return %arg0, %c0_i32 : i32, i32
  }
  func.func @transform_1(%arg0: i32) -> (i32, i32) {
    %c0_i32 = arith.constant 0 : i32
    %c0_i32_0 = arith.constant 0 : i32
    %c0_i32_1 = arith.constant 0 : i32
    return %c0_i32, %c0_i32_0 : i32, i32
  }
  func.func @transform_2(%arg0: i32) -> (i32, i32) {
    %c0_i32 = arith.constant 0 : i32
    %c0_i32_0 = arith.constant 0 : i32
    %c0_i32_1 = arith.constant 0 : i32
    return %c0_i32, %c0_i32_0 : i32, i32
  }
  func.func @transform_3(%arg0: i32) -> (i32, i32) {
    %c0_i32 = arith.constant 0 : i32
    %c0_i32_0 = arith.constant 0 : i32
    %c0_i32_1 = arith.constant 0 : i32
    return %c0_i32, %c0_i32_0 : i32, i32
  }
  func.func @transform_4(%arg0: i32) -> (i32, i32) {
    %c0_i32 = arith.constant 0 : i32
    %c0_i32_0 = arith.constant 0 : i32
    %c0_i32_1 = arith.constant 0 : i32
    return %c0_i32, %c0_i32_0 : i32, i32
  }
  func.func @transform_5(%arg0: i32) -> (i32, i32) {
    %c0_i32 = arith.constant 0 : i32
    %c0_i32_0 = arith.constant 0 : i32
    %c0_i32_1 = arith.constant 0 : i32
    return %c0_i32, %c0_i32_0 : i32, i32
  }
  func.func @transform_6(%arg0: i32) -> (i32, i32) {
    %c0_i32 = arith.constant 0 : i32
    %c0_i32_0 = arith.constant 0 : i32
    %c0_i32_1 = arith.constant 0 : i32
    return %c0_i32, %c0_i32_0 : i32, i32
  }
  func.func @transform_7(%arg0: i32) -> (i32, i32) {
    %c0_i32 = arith.constant 0 : i32
    %c0_i32_0 = arith.constant 0 : i32
    return %arg0, %c0_i32 : i32, i32
  }
}

</mosaic_0001>

<llo_original>
// kernel: tpu_custom_call.1
$region0: #{tpu_custom_call.1}
  #allocation0 [shape = 'u32[]', space=smem, size = 0x4, offset = 0x4, fixed_abs, tag = 'smem constant byte address 0x4 - core index']
  #allocation1 [shape = 'u32[144,128]{1,0:T(1,128)}', space=vmem, size = 0x12000, scoped, tag = 'internal scratch']
  %s0 = inlined_call_operand.vmem [shape: f32[8,4], index: 0, kind: input, shape index: {}]
  %s1 = inlined_call_operand.vmem [shape: f32[4,128], index: 1, kind: input, shape index: {}]
  %s2 = inlined_call_operand.vmem [shape: f32[1,128], index: 2, kind: input, shape index: {}]
  %s3 = inlined_call_operand.vmem [shape: bf16[128,256], index: 3, kind: input, shape index: {}]
  %s4 = inlined_call_operand.vmem [shape: f32[1,256], index: 4, kind: input, shape index: {}]
  %s5 = inlined_call_operand.vmem [shape: bf16[256,8], index: 5, kind: input, shape index: {}]
  %s6 = inlined_call_operand.vmem [shape: f32[1,8], index: 6, kind: input, shape index: {}]
  %s7 = inlined_call_operand.hbm [shape: f32[8,8], index: 7, kind: output, shape index: {}]
  %s8 = sld [smem:[#allocation0]]
  $region38: #{tpu_custom_call.1} parent=0
    _
  %s10 = ssub.s32 1, %s8
  %s11 = scalar_select 0, %s10, %s8
  $region1: #{tpu_custom_call.1} parent=0
    #allocation2 [shape = 'u8[4096]{0}', space=vmem, size = 0x1000, scoped, tag = 'output window, operand 0, single buffered']
    #allocation3 [shape = 's32[1]{0}', space=sflag, size = 0x4, scoped, tag = 'scoped memory for tpu_custom_call.1']
    %12 = vsyncpa [#allocation3], 0
    // Predicated region
    $region2: #{tpu_custom_call.1} parent=1 // pred_check
      _
    $region3: #{tpu_custom_call.1} parent=1 // pred_check_branch
      %14 = sbr.rel (0) target = $region5
    $region4: #{tpu_custom_call.1} parent=1 // pred_region
      _
    $region5: #{tpu_custom_call.1} parent=1 // pred_fallthru
      _
    // Predicated region
    $region6: #{tpu_custom_call.1} parent=1 // pred_check
      _
    $region7: #{tpu_custom_call.1} parent=1 // pred_check_branch
      %16 = sbr.rel (0) target = $region9
    $region8: #{tpu_custom_call.1} parent=1 // pred_region
      _
    $region9: #{tpu_custom_call.1} parent=1 // pred_fallthru
      _
    // Predicated region
    $region10: #{tpu_custom_call.1} parent=1 // pred_check
      _
    $region11: #{tpu_custom_call.1} parent=1 // pred_check_branch
      %18 = sbr.rel (0) target = $region13
    $region12: #{tpu_custom_call.1} parent=1 // pred_region
      _
    $region13: #{tpu_custom_call.1} parent=1 // pred_fallthru
      _
    // Predicated region
    $region14: #{tpu_custom_call.1} parent=1 // pred_check
      _
    $region15: #{tpu_custom_call.1} parent=1 // pred_check_branch
      %20 = sbr.rel (0) target = $region17
    $region16: #{tpu_custom_call.1} parent=1 // pred_region
      _
    $region17: #{tpu_custom_call.1} parent=1 // pred_fallthru
      _
    // Predicated region
    $region18: #{tpu_custom_call.1} parent=1 // pred_check
      _
    $region19: #{tpu_custom_call.1} parent=1 // pred_check_branch
      %22 = sbr.rel (0) target = $region21
    $region20: #{tpu_custom_call.1} parent=1 // pred_region
      _
    $region21: #{tpu_custom_call.1} parent=1 // pred_fallthru
      _
    // Predicated region
    $region22: #{tpu_custom_call.1} parent=1 // pred_check
      _
    $region23: #{tpu_custom_call.1} parent=1 // pred_check_branch
      %24 = sbr.rel (0) target = $region25
    $region24: #{tpu_custom_call.1} parent=1 // pred_region
      _
    $region25: #{tpu_custom_call.1} parent=1 // pred_fallthru
      _
    // Predicated region
    $region26: #{tpu_custom_call.1} parent=1 // pred_check
      _
    $region27: #{tpu_custom_call.1} parent=1 // pred_check_branch
      %26 = sbr.rel (0) target = $region29
    $region28: #{tpu_custom_call.1} parent=1 // pred_region
      _
    $region29: #{tpu_custom_call.1} parent=1 // pred_fallthru
      _
    %v28 = vld [vmem:[%s0] sm:$0xff]
    %v29 = vld [vmem:[%s1] sm:$0xf]
    %v30 = vld [vmem:[%s2] sm:$0x1]
    %v32 = vlaneseq
    %v33 = vshrl.u32 %v32, 7
    %v34 = vsub.s32 0, %v33
    %v35 = vrot.slane %v30, %v34
    %vm37 = vcmask 31744
    %v39 = vsel %vm37, %v28, 0
    %vm41 = vcmask 1043456
    %v43 = vsel %vm41, %v29, 0
    %45 = vmatprep.subr.mxu0 0.0
    %46 = vmatpush1.msra.mxu0 %v43
    %47 = vmatprep.subr.mxu0 0.0
    %48 = vmatpush1.msra.mxu0 0.0
    %49 = vmatprep.subr.mxu0 0.0
    %50 = vmatpush1.msra.mxu0 0.0
    %51 = vmatprep.subr.mxu0 0.0
    %52 = vmatpush1.msra.mxu0 0.0
    %53 = vmatprep.subr.mxu0 0.0
    %54 = vmatpush1.msra.mxu0 0.0
    %55 = vmatprep.subr.mxu0 0.0
    %56 = vmatpush1.msra.mxu0 0.0
    %57 = vmatprep.subr.mxu0 0.0
    %58 = vmatpush1.msra.mxu0 0.0
    %59 = vmatprep.subr.mxu0 0.0
    %60 = vmatpush1.msra.mxu0 0.0
    %61 = vmatprep.subr.mxu0 0.0
    %62 = vmatpush1.msra.mxu0 0.0
    %63 = vmatprep.subr.mxu0 0.0
    %64 = vmatpush1.msra.mxu0 0.0
    %65 = vmatprep.subr.mxu0 0.0
    %66 = vmatpush1.msra.mxu0 0.0
    %67 = vmatprep.subr.mxu0 0.0
    %68 = vmatpush1.msra.mxu0 0.0
    %69 = vmatprep.subr.mxu0 0.0
    %70 = vmatpush1.msra.mxu0 0.0
    %71 = vmatprep.subr.mxu0 0.0
    %72 = vmatpush1.msra.mxu0 0.0
    %73 = vmatprep.subr.mxu0 0.0
    %74 = vmatpush1.msra.mxu0 0.0
    %75 = vmatprep.subr.mxu0 0.0
    %76 = vmatpush1.msra.mxu0 0.0
    %77 = vmatprep.subr.mxu0 0.0
    %78 = vmatpush1.msra.mxu0 0.0
    %79 = vmatprep.subr.mxu0 0.0
    %80 = vmatpush1.msra.mxu0 0.0
    %81 = vmatprep.subr.mxu0 0.0
    %82 = vmatpush1.msra.mxu0 0.0
    %83 = vmatprep.subr.mxu0 0.0
    %84 = vmatpush1.msra.mxu0 0.0
    %85 = vmatprep.subr.mxu0 0.0
    %86 = vmatpush1.msra.mxu0 0.0
    %87 = vmatprep.subr.mxu0 0.0
    %88 = vmatpush1.msra.mxu0 0.0
    %89 = vmatprep.subr.mxu0 0.0
    %90 = vmatpush1.msra.mxu0 0.0
    %91 = vmatprep.subr.mxu0 0.0
    %92 = vmatpush1.msra.mxu0 0.0
    %93 = vmatprep.subr.mxu0 0.0
    %94 = vmatpush1.msra.mxu0 0.0
    %95 = vmatprep.subr.mxu0 0.0
    %96 = vmatpush1.msra.mxu0 0.0
    %97 = vmatprep.subr.mxu0 0.0
    %98 = vmatpush1.msra.mxu0 0.0
    %99 = vmatprep.subr.mxu0 0.0
    %100 = vmatpush1.msra.mxu0 0.0
    %101 = vmatprep.subr.mxu0 0.0
    %102 = vmatpush1.msra.mxu0 0.0
    %103 = vmatprep.subr.mxu0 0.0
    %104 = vmatpush1.msra.mxu0 0.0
    %105 = vmatprep.subr.mxu0 0.0
    %106 = vmatpush1.msra.mxu0 0.0
    %107 = vmatprep.subr.mxu0 0.0
    %108 = vmatpush1.msra.mxu0 0.0
    %109 = vmatprep.mubr.f32.mxu0 0.0
    %110 = vmatmul.mubr.f32.gmra.mrb[0].mxu0 %v39
    %v111 = vpop.f32.mrb[0].mxu0
    %v112 = vadd.f32 %v35, %v111
    %v113 = vpop.f32.mrb[0].mxu0
    %114 = vdwg.mxu0
    %v115 = vmax.f32 %v112, 0.0
    %v116 = vpack.c.bf16 %v115, %v115
    %v117 = vld [vmem:[%s3] sm:$0xff]
    %v118 = vld [vmem:[%s3 + $0x8] sm:$0xff]
    %v119 = vld [vmem:[%s3 + $0x10] sm:$0xff]
    %v120 = vld [vmem:[%s3 + $0x18] sm:$0xff]
    %v121 = vld [vmem:[%s3 + $0x20] sm:$0xff]
    %v122 = vld [vmem:[%s3 + $0x28] sm:$0xff]
    %v123 = vld [vmem:[%s3 + $0x30] sm:$0xff]
    %v124 = vld [vmem:[%s3 + $0x38] sm:$0xff]
    %v125 = vld [vmem:[%s3 + $0x40] sm:$0xff]
    %v126 = vld [vmem:[%s3 + $0x48] sm:$0xff]
    %v127 = vld [vmem:[%s3 + $0x50] sm:$0xff]
    %v128 = vld [vmem:[%s3 + $0x58] sm:$0xff]
    %v129 = vld [vmem:[%s3 + $0x60] sm:$0xff]
    %v130 = vld [vmem:[%s3 + $0x68] sm:$0xff]
    %v131 = vld [vmem:[%s3 + $0x70] sm:$0xff]
    %v132 = vld [vmem:[%s3 + $0x78] sm:$0xff]
    %v133 = vld [vmem:[%s4] sm:$0x3]
    %v135 = vlaneseq
    %v136 = vshrl.u32 %v135, 7
    %v137 = vsub.s32 0, %v136
    %v138 = vrot.slane %v133, %v137
    %v139 = vlaneseq
    %v140 = vshrl.u32 %v139, 7
    %v141 = vsub.s32 1, %v140
    %v142 = vrot.slane %v133, %v141
    %v161 = vunpack.c.l.b16 %v117
    %v162 = vunpack.c.h.b16 %v117
    %v163 = vunpack.c.l.b16 %v118
    %v164 = vunpack.c.h.b16 %v118
    %v165 = vunpack.c.l.b16 %v119
    %v166 = vunpack.c.h.b16 %v119
    %v167 = vunpack.c.l.b16 %v120
    %v168 = vunpack.c.h.b16 %v120
    %v169 = vunpack.c.l.b16 %v121
    %v170 = vunpack.c.h.b16 %v121
    %v171 = vunpack.c.l.b16 %v122
    %v172 = vunpack.c.h.b16 %v122
    %v173 = vunpack.c.l.b16 %v123
    %v174 = vunpack.c.h.b16 %v123
    %v175 = vunpack.c.l.b16 %v124
    %v176 = vunpack.c.h.b16 %v124
    %v177 = vunpack.c.l.b16 %v125
    %v178 = vunpack.c.h.b16 %v125
    %v179 = vunpack.c.l.b16 %v126
    %v180 = vunpack.c.h.b16 %v126
    %v181 = vunpack.c.l.b16 %v127
    %v182 = vunpack.c.h.b16 %v127
    %v183 = vunpack.c.l.b16 %v128
    %v184 = vunpack.c.h.b16 %v128
    %v185 = vunpack.c.l.b16 %v129
    %v186 = vunpack.c.h.b16 %v129
    %v187 = vunpack.c.l.b16 %v130
    %v188 = vunpack.c.h.b16 %v130
    %v189 = vunpack.c.l.b16 %v131
    %v190 = vunpack.c.h.b16 %v131
    %v191 = vunpack.c.l.b16 %v132
    %v192 = vunpack.c.h.b16 %v132
    %v193 = vpack.c.b16 %v163, %v161
    %v194 = vpack.c.b16 %v164, %v162
    %v195 = vpack.c.b16 %v167, %v165
    %v196 = vpack.c.b16 %v168, %v166
    %v197 = vpack.c.b16 %v171, %v169
    %v198 = vpack.c.b16 %v172, %v170
    %v199 = vpack.c.b16 %v175, %v173
    %v200 = vpack.c.b16 %v176, %v174
    %v201 = vpack.c.b16 %v179, %v177
    %v202 = vpack.c.b16 %v180, %v178
    %v203 = vpack.c.b16 %v183, %v181
    %v204 = vpack.c.b16 %v184, %v182
    %v205 = vpack.c.b16 %v187, %v185
    %v206 = vpack.c.b16 %v188, %v186
    %v207 = vpack.c.b16 %v191, %v189
    %v208 = vpack.c.b16 %v192, %v190
    %225 = vmatprep.subr.bf16.mxu0 %v194
    %226 = vmatpush1.bf16.msra.mxu0 %v193
    %227 = vmatprep.subr.bf16.mxu0 %v196
    %228 = vmatpush1.bf16.msra.mxu0 %v195
    %229 = vmatprep.subr.bf16.mxu0 %v198
    %230 = vmatpush1.bf16.msra.mxu0 %v197
    %231 = vmatprep.subr.bf16.mxu0 %v200
    %232 = vmatpush1.bf16.msra.mxu0 %v199
    %233 = vmatprep.subr.bf16.mxu0 %v202
    %234 = vmatpush1.bf16.msra.mxu0 %v201
    %235 = vmatprep.subr.bf16.mxu0 %v204
    %236 = vmatpush1.bf16.msra.mxu0 %v203
    %237 = vmatprep.subr.bf16.mxu0 %v206
    %238 = vmatpush1.bf16.msra.mxu0 %v205
    %239 = vmatprep.subr.bf16.mxu0 %v208
    %240 = vmatpush1.bf16.msra.mxu0 %v207
    %241 = vmatprep.subr.bf16.mxu0 0
    %242 = vmatpush1.bf16.msra.mxu0 0
    %243 = vmatprep.subr.bf16.mxu0 0
    %244 = vmatpush1.bf16.msra.mxu0 0
    %245 = vmatprep.subr.bf16.mxu0 0
    %246 = vmatpush1.bf16.msra.mxu0 0
    %247 = vmatprep.subr.bf16.mxu0 0
    %248 = vmatpush1.bf16.msra.mxu0 0
    %249 = vmatprep.subr.bf16.mxu0 0
    %250 = vmatpush1.bf16.msra.mxu0 0
    %251 = vmatprep.subr.bf16.mxu0 0
    %252 = vmatpush1.bf16.msra.mxu0 0
    %253 = vmatprep.subr.bf16.mxu0 0
    %254 = vmatpush1.bf16.msra.mxu0 0
    %255 = vmatprep.subr.bf16.mxu0 0
    %256 = vmatpush1.bf16.msra.mxu0 0
    %257 = vmatprep.mubr.bf16.mxu0 0
    %258 = vmatmul.mubr.bf16.gmra.mrb[0].mxu0 %v116
    %v259 = vpop.f32.mrb[0].mxu0
    %v260 = vadd.f32 %v138, %v259
    %v261 = vpop.f32.mrb[0].mxu0
    %v262 = vadd.f32 %v142, %v261
    %v263 = vpop.f32.mrb[0].mxu0
    %v264 = vpop.f32.mrb[0].mxu0
    %265 = vdwg.mxu0
    %v266 = vmax.f32 %v260, 0.0
    %v267 = vmax.f32 %v262, 0.0
    %v268 = vpack.c.bf16 %v266, %v266
    %v269 = vpack.c.bf16 %v267, %v267
    %v270 = vld [vmem:[%s5] sm:$0xf]
    %v271 = vld [vmem:[%s5 + $0x4] sm:$0xf]
    %v272 = vld [vmem:[%s5 + $0x8] sm:$0xf]
    %v273 = vld [vmem:[%s5 + $0xc] sm:$0xf]
    %v274 = vld [vmem:[%s5 + $0x10] sm:$0xf]
    %v275 = vld [vmem:[%s5 + $0x14] sm:$0xf]
    %v276 = vld [vmem:[%s5 + $0x18] sm:$0xf]
    %v277 = vld [vmem:[%s5 + $0x1c] sm:$0xf]
    %v278 = vld [vmem:[%s5 + $0x20] sm:$0xf]
    %v279 = vld [vmem:[%s5 + $0x24] sm:$0xf]
    %v280 = vld [vmem:[%s5 + $0x28] sm:$0xf]
    %v281 = vld [vmem:[%s5 + $0x2c] sm:$0xf]
    %v282 = vld [vmem:[%s5 + $0x30] sm:$0xf]
    %v283 = vld [vmem:[%s5 + $0x34] sm:$0xf]
    %v284 = vld [vmem:[%s5 + $0x38] sm:$0xf]
    %v285 = vld [vmem:[%s5 + $0x3c] sm:$0xf]
    %v286 = vld [vmem:[%s5 + $0x40] sm:$0xf]
    %v287 = vld [vmem:[%s5 + $0x44] sm:$0xf]
    %v288 = vld [vmem:[%s5 + $0x48] sm:$0xf]
    %v289 = vld [vmem:[%s5 + $0x4c] sm:$0xf]
    %v290 = vld [vmem:[%s5 + $0x50] sm:$0xf]
    %v291 = vld [vmem:[%s5 + $0x54] sm:$0xf]
    %v292 = vld [vmem:[%s5 + $0x58] sm:$0xf]
    %v293 = vld [vmem:[%s5 + $0x5c] sm:$0xf]
    %v294 = vld [vmem:[%s5 + $0x60] sm:$0xf]
    %v295 = vld [vmem:[%s5 + $0x64] sm:$0xf]
    %v296 = vld [vmem:[%s5 + $0x68] sm:$0xf]
    %v297 = vld [vmem:[%s5 + $0x6c] sm:$0xf]
    %v298 = vld [vmem:[%s5 + $0x70] sm:$0xf]
    %v299 = vld [vmem:[%s5 + $0x74] sm:$0xf]
    %v300 = vld [vmem:[%s5 + $0x78] sm:$0xf]
    %v301 = vld [vmem:[%s5 + $0x7c] sm:$0xf]
    %v302 = vld [vmem:[%s6] sm:$0x1]
    %v304 = vlaneseq
    %v305 = vshrl.u32 %v304, 7
    %v306 = vsub.s32 0, %v305
    %v307 = vrot.slane %v302, %v306
    %v341 = vunpack.c.l.b16 %v270
    %v342 = vunpack.c.l.b16 %v271
    %v343 = vunpack.c.l.b16 %v272
    %v344 = vunpack.c.l.b16 %v273
    %v345 = vunpack.c.l.b16 %v274
    %v346 = vunpack.c.l.b16 %v275
    %v347 = vunpack.c.l.b16 %v276
    %v348 = vunpack.c.l.b16 %v277
    %v349 = vunpack.c.l.b16 %v278
    %v350 = vunpack.c.l.b16 %v279
    %v351 = vunpack.c.l.b16 %v280
    %v352 = vunpack.c.l.b16 %v281
    %v353 = vunpack.c.l.b16 %v282
    %v354 = vunpack.c.l.b16 %v283
    %v355 = vunpack.c.l.b16 %v284
    %v356 = vunpack.c.l.b16 %v285
    %v357 = vunpack.c.l.b16 %v286
    %v358 = vunpack.c.l.b16 %v287
    %v359 = vunpack.c.l.b16 %v288
    %v360 = vunpack.c.l.b16 %v289
    %v361 = vunpack.c.l.b16 %v290
    %v362 = vunpack.c.l.b16 %v291
    %v363 = vunpack.c.l.b16 %v292
    %v364 = vunpack.c.l.b16 %v293
    %v365 = vunpack.c.l.b16 %v294
    %v366 = vunpack.c.l.b16 %v295
    %v367 = vunpack.c.l.b16 %v296
    %v368 = vunpack.c.l.b16 %v297
    %v369 = vunpack.c.l.b16 %v298
    %v370 = vunpack.c.l.b16 %v299
    %v371 = vunpack.c.l.b16 %v300
    %v372 = vunpack.c.l.b16 %v301
    %v373 = vpack.c.b16 %v342, %v341
    %v374 = vpack.c.b16 %v344, %v343
    %v375 = vpack.c.b16 %v346, %v345
    %v376 = vpack.c.b16 %v348, %v347
    %v377 = vpack.c.b16 %v350, %v349
    %v378 = vpack.c.b16 %v352, %v351
    %v379 = vpack.c.b16 %v354, %v353
    %v380 = vpack.c.b16 %v356, %v355
    %v381 = vpack.c.b16 %v358, %v357
    %v382 = vpack.c.b16 %v360, %v359
    %v383 = vpack.c.b16 %v362, %v361
    %v384 = vpack.c.b16 %v364, %v363
    %v385 = vpack.c.b16 %v366, %v365
    %v386 = vpack.c.b16 %v368, %v367
    %v387 = vpack.c.b16 %v370, %v369
    %v388 = vpack.c.b16 %v372, %v371
    %405 = vmatprep.subr.bf16.mxu0 0
    %406 = vmatpush1.bf16.msra.mxu0 %v373
    %407 = vmatprep.subr.bf16.mxu0 0
    %408 = vmatpush1.bf16.msra.mxu0 %v374
    %409 = vmatprep.subr.bf16.mxu0 0
    %410 = vmatpush1.bf16.msra.mxu0 %v375
    %411 = vmatprep.subr.bf16.mxu0 0
    %412 = vmatpush1.bf16.msra.mxu0 %v376
    %413 = vmatprep.subr.bf16.mxu0 0
    %414 = vmatpush1.bf16.msra.mxu0 %v377
    %415 = vmatprep.subr.bf16.mxu0 0
    %416 = vmatpush1.bf16.msra.mxu0 %v378
    %417 = vmatprep.subr.bf16.mxu0 0
    %418 = vmatpush1.bf16.msra.mxu0 %v379
    %419 = vmatprep.subr.bf16.mxu0 0
    %420 = vmatpush1.bf16.msra.mxu0 %v380
    %421 = vmatprep.subr.bf16.mxu0 0
    %422 = vmatpush1.bf16.msra.mxu0 %v381
    %423 = vmatprep.subr.bf16.mxu0 0
    %424 = vmatpush1.bf16.msra.mxu0 %v382
    %425 = vmatprep.subr.bf16.mxu0 0
    %426 = vmatpush1.bf16.msra.mxu0 %v383
    %427 = vmatprep.subr.bf16.mxu0 0
    %428 = vmatpush1.bf16.msra.mxu0 %v384
    %429 = vmatprep.subr.bf16.mxu0 0
    %430 = vmatpush1.bf16.msra.mxu0 %v385
    %431 = vmatprep.subr.bf16.mxu0 0
    %432 = vmatpush1.bf16.msra.mxu0 %v386
    %433 = vmatprep.subr.bf16.mxu0 0
    %434 = vmatpush1.bf16.msra.mxu0 %v387
    %435 = vmatprep.subr.bf16.mxu0 0
    %436 = vmatpush1.bf16.msra.mxu0 %v388
    %437 = vmatprep.mubr.bf16.mxu0 %v269
    %438 = vmatmul.mubr.bf16.gmra.mrb[0].mxu0 %v268
    %v439 = vpop.f32.mrb[0].mxu0
    %v440 = vadd.f32 %v307, %v439
    %v441 = vpop.f32.mrb[0].mxu0
    %v442 = vpop.f32.mrb[0].mxu0
    %v443 = vpop.f32.mrb[0].mxu0
    %444 = vdwg.mxu0
    %446 = vrot.lane.b32.xlu0 %v440, 127
    %v447 = vpop.permute.xlu0 %446
    %v449 = vadd.f32 %v440, %v447
    %v450 = vmul.f32 %v449, 0.5
    %452 = vrot.lane.b32.xlu0 %v450, 2
    %v453 = vpop.permute.xlu0 %452
    %v455 = vsub.f32 %v440, %v453
    %457 = vset.pattern.permute.xlu0 2
    %458 = vperm.xlu0 %457, %v455
    %v459 = vpop.permute.xlu0 %458
    %v461 = vadd.f32 %v440, %v459
    %vm462 = vcmask 64512
    %463 = vst.msk [vmem:[#allocation2] sm:$0xff] %vm462, %v461
    // Predicated region
    $region30: #{tpu_custom_call.1} parent=1 // pred_check
      _
    $region31: #{tpu_custom_call.1} parent=1 // pred_check_branch
      %465 = sbr.rel (0) target = $region33
    $region32: #{tpu_custom_call.1} parent=1 // pred_region
      %s467 = ssub.s32 128, 128
      %468 = vsyncadd [#allocation3], %s467
      %s470 = sshll.u32 [#allocation2], 4
      %s471 = int_to_ptr.vmem [resolvable:$true] %s470
      %473 = dma.vmem_to_hbm [thread:$0]  %s471, 128, %s7, [#allocation3]
    $region33: #{tpu_custom_call.1} parent=1 // pred_fallthru
      _
    // Predicated region
    $region34: #{tpu_custom_call.1} parent=1 // pred_check
      _
    $region35: #{tpu_custom_call.1} parent=1 // pred_check_branch
      %475 = sbr.rel (0) target = $region37
    $region36: #{tpu_custom_call.1} parent=1 // pred_region
      %476 = dma.done [#allocation3], 128
    $region37: #{tpu_custom_call.1} parent=1 // pred_fallthru
      _
    %477 = vsyncpa [#allocation3], 1

</llo_original>
